<compile_context>
chip_gen: v5e
topology: v5e:2x2
jax: 0.10.0
libtpu: 0.0.40
codegen_flags: <defaults>
</compile_context>

<pallas_src>
import functools

import jax
import jax.numpy as jnp
from jax.experimental import pallas as pl
from jax.experimental.pallas import tpu as pltpu


_TARGET_BLOCK_BYTES = 4 * 1024 * 1024   # ~4 MiB blocks: >=85% HBM roofline (v6e data)
_MAX_BLOCK_BYTES = 10 * 1024 * 1024     # 4 double-buffered copies stay < 48 MiB (v7x safe)
_MIN_SPLIT_ROWS = 64                    # only force >=2 grid steps if there is real work
_LANE_WIDTHS = (2048, 1024, 512, 256, 128)


def _scale_kernel(x_ref, o_ref, *, scale, fn):
    """One (rows, width) tile: o = fn(x) * scale (fn optional, elementwise)."""
    x = x_ref[...]                      # native dtype, no extra VMEM copy
    if fn is not None:
        x = fn(x)
    # Multiply at the tensor's dtype (matches torch semantics for float tensors).
    o_ref[...] = (x * jnp.asarray(scale, dtype=x.dtype)).astype(o_ref.dtype)


def _choose_lane_width(total, C):
    """Lane-dense re-blocking width (multiple of 128) if total divides; else None."""
    for w in _LANE_WIDTHS:
        if total % w == 0:
            return w
    return None


def _choose_tm(M, row_bytes):
    """Rows per block: ~TARGET bytes, multiple of 32, VMEM-capped, >=2 grid steps."""
    tm = _TARGET_BLOCK_BYTES // row_bytes
    tm = max(32, (tm // 32) * 32)
    cap = max(8, (_MAX_BLOCK_BYTES // row_bytes) // 8 * 8)   # VMEM safety cap
    tm = min(tm, cap)
    if M <= tm:
        if M >= _MIN_SPLIT_ROWS:
            # Whole array would fit in one block: split anyway so both of
            # v7x's TensorCores get work (grid of (1,) leaves one core idle).
            half = (M + 1) // 2
            tm_split = ((half + 31) // 32) * 32
            if tm_split < M:
                return tm_split
        return M            # single full-extent block (always layout-legal)
    return tm


@functools.partial(jax.jit, static_argnames=("scale", "fn"))
def scale_forward(x, scale, fn=None):
    """Pallas implementation of Scale.forward: fn(x) * scale.

    x:     any shape (..., C).
    scale: python float (module constructor constant) -> baked into kernel.
    fn:    optional *strictly elementwise* JAX function fused into the kernel
           (per-element only: no reductions / per-channel structure, since the
           lane-dense re-blocking mixes channels across lanes).
    """
    orig_shape = x.shape
    C = orig_shape[-1]
    total = x.size
    itemsize = jnp.dtype(x.dtype).itemsize

    # Layout: prefer a wide lane-dense (M, W) re-blocking (free row-major
    # reshape, no HBM pass); fall back to (rows, C) with the full channel dim.
    W = _choose_lane_width(total, C)
    if W is not None:
        x2 = x.reshape(total // W, W)
    else:
        x2 = x.reshape(-1, C)
        W = C
    M = x2.shape[0]

    tm = _choose_tm(M, W * itemsize)
    grid = (pl.cdiv(M, tm),)

    out2 = pl.pallas_call(
        functools.partial(_scale_kernel, scale=scale, fn=fn),
        out_shape=jax.ShapeDtypeStruct((M, W), x.dtype),
        grid_spec=pltpu.PrefetchScalarGridSpec(
            num_scalar_prefetch=0,
            grid=grid,
            in_specs=[pl.BlockSpec((tm, W), lambda i: (i, 0))],
            out_specs=pl.BlockSpec((tm, W), lambda i: (i, 0)),
        ),
        compiler_params=pltpu.CompilerParams(
            dimension_semantics=("parallel",),
            vmem_limit_bytes=48 * 1024 * 1024,
        ),
    )(x2)

    return out2.reshape(orig_shape)


if __name__ == "__main__":
    key = jax.random.PRNGKey(0)
    k1, k2, k3, k4 = jax.random.split(key, 4)

    # Case 1: plain Scale (fn == identity), conformer-style scale = 0.5,
    # (batch, seq, channels). Total divides 2048 -> lane-dense repack path.
    B, T, C = 2, 16, 128
    x = jax.random.normal(k1, (B, T, C), dtype=jnp.float32)
    out = jax.block_until_ready(scale_forward(x, 0.5))
    ref = x * 0.5
    assert out.shape == x.shape
    assert jnp.allclose(out, ref, atol=1e-6, rtol=1e-6)

    # Case 2: elementwise fn fused into the tile (Scale(0.5, gelu)-style),
    # small odd channel count C=32 -> repacked to a lane-dense 512-wide block.
    B2, T2, C2 = 2, 8, 32
    x2 = jax.random.normal(k2, (B2, T2, C2), dtype=jnp.float32)
    out2 = jax.block_until_ready(scale_forward(x2, 0.5, fn=jax.nn.gelu))
    ref2 = jax.nn.gelu(x2) * 0.5
    assert out2.shape == x2.shape
    assert jnp.allclose(out2, ref2, atol=1e-5, rtol=1e-5)

    # Case 3: moderate size to exercise the >=2-step grid split (both TCs busy).
    B3, T3, C3 = 4, 128, 256
    x3 = jax.random.normal(k3, (B3, T3, C3), dtype=jnp.float32)
    out3 = jax.block_until_ready(scale_forward(x3, 0.5))
    ref3 = x3 * 0.5
    assert out3.shape == x3.shape
    assert jnp.allclose(out3, ref3, atol=1e-6, rtol=1e-6)

    # Case 4: total size not divisible by 128 -> (rows, C) full-channel fallback.
    B4, T4, C4 = 2, 8, 12
    x4 = jax.random.normal(k4, (B4, T4, C4), dtype=jnp.float32)
    out4 = jax.block_until_ready(scale_forward(x4, 0.5, fn=jax.nn.gelu))
    ref4 = jax.nn.gelu(x4) * 0.5
    assert out4.shape == x4.shape
    assert jnp.allclose(out4, ref4, atol=1e-5, rtol=1e-5)

    print("KERNEL_OK")
</pallas_src>

<mosaic_0001>
module attributes {stable_mosaic.version = 11 : i64} {
  func.func @_scale_kernel(%arg0: i32, %arg1: memref<2x2048xf32, #tpu.memory_space<vmem>>, %arg2: memref<2x2048xf32, #tpu.memory_space<vmem>>) attributes {dimension_semantics = [#tpu.dimension_semantics<parallel>], iteration_bounds = array<i64: 1>, scalar_prefetch = 0 : i64, scratch_operands = 0 : i64, tpu.core_type = #tpu.core_type<tc>, window_params = [{transform_indices = @transform_0, window_bounds = array<i64: 2, 2048>}, {transform_indices = @transform_1, window_bounds = array<i64: 2, 2048>}]} {
    %c0 = arith.constant 0 : index
    %c0_0 = arith.constant 0 : index
    %0 = vector.load %arg1[%c0, %c0_0] : memref<2x2048xf32, #tpu.memory_space<vmem>>, vector<2x2048xf32>
    %cst = arith.constant 5.000000e-01 : f32
    %1 = vector.broadcast %cst : f32 to vector<2x2048xf32>
    %2 = arith.mulf %0, %1 : vector<2x2048xf32>
    %c0_1 = arith.constant 0 : index
    %c0_2 = arith.constant 0 : index
    %3 = vector.load %arg2[%c0_1, %c0_2] : memref<2x2048xf32, #tpu.memory_space<vmem>>, vector<2x2048xf32>
    tpu.vector_store %arg2[%c0_1, %c0_2], %2 {strides = array<i32>} : memref<2x2048xf32, #tpu.memory_space<vmem>>, vector<2x2048xf32>,
    return
  }
  func.func @transform_0(%arg0: i32) -> (i32, i32) {
    %c0_i32 = arith.constant 0 : i32
    %c0_i32_0 = arith.constant 0 : i32
    return %arg0, %c0_i32 : i32, i32
  }
  func.func @transform_1(%arg0: i32) -> (i32, i32) {
    %c0_i32 = arith.constant 0 : i32
    %c0_i32_0 = arith.constant 0 : i32
    return %arg0, %c0_i32 : i32, i32
  }
}

</mosaic_0001>

<llo_original>
// kernel: scale_forward.1
$region0: #{scale_forward.1}
  #allocation0 [shape = 'u32[]', space=smem, size = 0x4, offset = 0x4, fixed_abs, tag = 'smem constant byte address 0x4 - core index']
  #allocation1 [shape = 'u32[72,128]{1,0:T(1,128)}', space=vmem, size = 0x9000, scoped, tag = 'internal scratch']
  %s0 = inlined_call_operand.vmem [shape: f32[2,2048], index: 0, kind: input, shape index: {}]
  %s1 = inlined_call_operand.vmem [shape: f32[2,2048], index: 1, kind: output, shape index: {}]
  %s2 = sld [smem:[#allocation0]]
  $region14: #{scale_forward.1} parent=0
    _
  %s4 = ssub.s32 1, %s2
  %s5 = scalar_select 0, %s4, %s2
  // Predicated region
  $region2: #{scale_forward.1} parent=0 // pred_check
    _
  $region3: #{scale_forward.1} parent=0 // pred_check_branch
    %7 = sbr.rel (0) target = $region5
  $region4: #{scale_forward.1} parent=0 // pred_region
    _
  $region5: #{scale_forward.1} parent=0 // pred_fallthru
    _
  %v8 = vld [vmem:[%s0] sm:$0xff]
  %v9 = vld [vmem:[%s0 + $0x8] sm:$0xff]
  %v10 = vld [vmem:[%s0 + $0x10] sm:$0xff]
  %v11 = vld [vmem:[%s0 + $0x18] sm:$0xff]
  %v12 = vmul.f32 %v8, 0.5
  %v13 = vmul.f32 %v9, 0.5
  %v14 = vmul.f32 %v10, 0.5
  %v15 = vmul.f32 %v11, 0.5
  %16 = vst [vmem:[%s1] sm:$0xff] %v12
  %17 = vst [vmem:[%s1 + $0x8] sm:$0xff] %v13
  %18 = vst [vmem:[%s1 + $0x10] sm:$0xff] %v14
  %19 = vst [vmem:[%s1 + $0x18] sm:$0xff] %v15
  // Predicated region
  $region6: #{scale_forward.1} parent=0 // pred_check
    _
  $region7: #{scale_forward.1} parent=0 // pred_check_branch
    %21 = sbr.rel (0) target = $region9
  $region8: #{scale_forward.1} parent=0 // pred_region
    _
  $region9: #{scale_forward.1} parent=0 // pred_fallthru
    _
  // Predicated region
  $region10: #{scale_forward.1} parent=0 // pred_check
    _
  $region11: #{scale_forward.1} parent=0 // pred_check_branch
    %23 = sbr.rel (0) target = $region13
  $region12: #{scale_forward.1} parent=0 // pred_region
    _
  $region13: #{scale_forward.1} parent=0 // pred_fallthru
    _

</llo_original>
